<compile_context>
chip_gen: v7x
topology: tpu7x:2x2x1
jax: 0.10.0
libtpu: 0.0.40
codegen_flags: <defaults>
</compile_context>

<pallas_src>
import functools

import jax
import jax.numpy as jnp
from jax import lax
from jax.experimental import pallas as pl
from jax.experimental.pallas import tpu as pltpu


def _focal_loss_kernel(cls_ref, logits_ref, tgt_ref, out_ref, *,
                       alpha, gamma, batch, block_b):
    # cls_ref:    (1, C, 1)  int32 class ids 0..C-1 (fetched once)
    # logits_ref: (bb, C, Q) logits (any float dtype; upcast to f32 inside)
    # tgt_ref:    (bb, 1, Q) int32 labels in [0, C]   (C == "no object")
    # out_ref:    (1, 1, Q)  f32 partial sums (over this block's batch rows + classes)
    g = pl.program_id(0)
    C = logits_ref.shape[1]
    Q = logits_ref.shape[2]

    # Hoisted out of the per-row loop: lane-splat of the class ids.
    cls_cq = jnp.broadcast_to(cls_ref[0], (C, Q))          # (C, Q) int32

    def row(i, acc):
        x = logits_ref[i].astype(jnp.float32)              # (C, Q)
        t = tgt_ref[i]                                      # (1, Q) int32
        # one_hot(t, C+1)[..., :-1] without materializing it: label == C -> all False
        is_pos = cls_cq == t                                # (C, Q) bool
        nx = -x
        u = jnp.where(is_pos, nx, x)                        # u = -z
        e = jnp.exp(jnp.minimum(x, nx))                     # exp(-|x|) == exp(-|u|)   (EUP)
        ce = jnp.maximum(u, 0.0) + jnp.log1p(e)             # stable BCE = softplus(u) (EUP)
        loss = ce
        if gamma != 0.0:
            # (1 - p_t)^gamma = sigmoid(u)^gamma = exp(gamma * (u - softplus(u)))
            loss = loss * jnp.exp(gamma * (u - ce))         # (EUP)
        if alpha >= 0.0:
            loss = loss * jnp.where(is_pos, jnp.float32(alpha), jnp.float32(1.0 - alpha))
        part = jnp.sum(loss, axis=0, keepdims=True)         # (1, Q): reduce classes (XLU)
        if batch % block_b != 0:                            # mask padded tail-block rows
            valid = (g * block_b + i) < batch
            part = jnp.where(valid, part, jnp.zeros_like(part))
        return acc + part

    acc0 = jnp.zeros((1, Q), jnp.float32)
    if block_b == 1:
        acc = row(0, acc0)
    else:
        acc = lax.fori_loop(0, block_b, row, acc0, unroll=2)
    out_ref[...] = acc[None]                                # (1, 1, Q)


def _pick_batch_block(B, C, Q, bytes_per_elem, budget_bytes=8 << 20):
    """Batch rows per grid step: biggest tile under the budget, but keep >= 2
    grid blocks so both v7x TensorCores get work."""
    per_b = max(1, C * Q * bytes_per_elem)
    bb = max(1, min(B, budget_bytes // per_b))
    if B >= 2:
        bb = min(bb, -(-B // 2))    # ceil(B/2) -> at least 2 grid steps
    return int(bb)


def focal_loss(inputs, targets, num_boxes, *, alpha=0.25, gamma=2.0, n_cls=32):
    """Matches FocalLoss.forward(inputs, targets, num_boxes).

    inputs:  (B, n_cls, Q) float logits (channels-first, like the PyTorch module)
    targets: (B, Q) int class indices in [0, n_cls]  (n_cls = "no object")
    """
    B, C, Q = inputs.shape
    assert C == n_cls
    tgt = targets.astype(jnp.int32).reshape(B, 1, Q)        # lane-dense labels, no transpose
    class_ids = jnp.arange(C, dtype=jnp.int32).reshape(1, C, 1)

    bb = _pick_batch_block(B, C, Q, bytes_per_elem=inputs.dtype.itemsize)
    n_blocks = pl.cdiv(B, bb)

    kern = functools.partial(_focal_loss_kernel, alpha=float(alpha),
                             gamma=float(gamma), batch=B, block_b=bb)
    partial = pl.pallas_call(
        kern,
        out_shape=jax.ShapeDtypeStruct((n_blocks, 1, Q), jnp.float32),
        grid_spec=pltpu.PrefetchScalarGridSpec(
            num_scalar_prefetch=0,
            grid=(n_blocks,),
            in_specs=[
                pl.BlockSpec((1, C, 1), lambda g: (0, 0, 0)),    # class ids, fetched once
                pl.BlockSpec((bb, C, Q), lambda g: (g, 0, 0)),   # logits
                pl.BlockSpec((bb, 1, Q), lambda g: (g, 0, 0)),   # targets
            ],
            out_specs=pl.BlockSpec((1, 1, Q), lambda g: (g, 0, 0)),
        ),
        compiler_params=pltpu.CompilerParams(
            dimension_semantics=("parallel",),
            vmem_limit_bytes=48 * 1024 * 1024,
        ),
    )(class_ids, inputs, tgt)

    # Reference: loss.mean(1).sum() / num_boxes * Q  ==  sum(loss) / num_boxes.
    return jnp.sum(partial) / num_boxes


def _focal_loss_ref(inputs, targets, num_boxes, alpha, gamma, n_cls):
    """Pure-JAX reference mirroring the PyTorch module exactly."""
    x = jnp.transpose(inputs, (0, 2, 1)).astype(jnp.float32)
    onehot = jax.nn.one_hot(targets, n_cls + 1)[:, :, :-1].astype(jnp.float32)
    prob = jax.nn.sigmoid(x)
    ce = jnp.maximum(x, 0.0) - x * onehot + jnp.log1p(jnp.exp(-jnp.abs(x)))
    p_t = prob * onehot + (1.0 - prob) * (1.0 - onehot)
    loss = ce * (1.0 - p_t) ** gamma
    if alpha >= 0:
        alpha_t = alpha * onehot + (1.0 - alpha) * (1.0 - onehot)
        loss = alpha_t * loss
    return loss.mean(1).sum() / num_boxes * x.shape[1]


if __name__ == "__main__":
    # Module "parameters" (from __init__): alpha, gamma, n_cls.
    alpha, gamma, n_cls = 0.25, 2.0, 32
    B, Q = 2, 8              # batch, number of queries
    num_boxes = 5.0

    key = jax.random.PRNGKey(0)
    k1, k2 = jax.random.split(key)
    inputs = jax.random.normal(k1, (B, n_cls, Q), dtype=jnp.float32)
    targets = jax.random.randint(k2, (B, Q), 0, n_cls + 1, dtype=jnp.int32)

    out = focal_loss(inputs, targets, num_boxes, alpha=alpha, gamma=gamma, n_cls=n_cls)
    out = jax.block_until_ready(out)

    ref = _focal_loss_ref(inputs, targets, num_boxes, alpha, gamma, n_cls)
    assert jnp.allclose(out, ref, rtol=1e-4, atol=1e-5), (out, ref)
    print("KERNEL_OK")
</pallas_src>

<mosaic_0001>
module attributes {stable_mosaic.version = 11 : i64} {
  func.func @_focal_loss_kernel(%arg0: i32, %arg1: memref<1x32x1xi32, #tpu.memory_space<vmem>>, %arg2: memref<1x32x8xf32, #tpu.memory_space<vmem>>, %arg3: memref<1x1x8xi32, #tpu.memory_space<vmem>>, %arg4: memref<1x1x8xf32, #tpu.memory_space<vmem>>) attributes {dimension_semantics = [#tpu.dimension_semantics<parallel>], iteration_bounds = array<i64: 2>, scalar_prefetch = 0 : i64, scratch_operands = 0 : i64, tpu.core_type = #tpu.core_type<tc>, window_params = [{pipeline_mode = #tpu.pipeline_mode<synchronous>, transform_indices = @transform_0, window_bounds = array<i64: 1, 32, 1>}, {transform_indices = @transform_1, window_bounds = array<i64: 1, 32, 8>}, {transform_indices = @transform_2, window_bounds = array<i64: 1, 1, 8>}, {transform_indices = @transform_3, window_bounds = array<i64: 1, 1, 8>}]} {
    %c0 = arith.constant 0 : index
    %c0_0 = arith.constant 0 : index
    %c0_1 = arith.constant 0 : index
    %0 = vector.load %arg1[%c0, %c0_0, %c0_1] : memref<1x32x1xi32, #tpu.memory_space<vmem>>, vector<1x32x1xi32>
    %1 = vector.shape_cast %0 : vector<1x32x1xi32> to vector<32x1xi32>
    %2 = vector.shape_cast %1 : vector<32x1xi32> to vector<32x1xi32>
    %3 = vector.broadcast %2 : vector<32x1xi32> to vector<32x8xi32>
    %cst = arith.constant 0.000000e+00 : f32
    %4 = vector.broadcast %cst : f32 to vector<1x8xf32>
    %c0_2 = arith.constant 0 : index
    %c0_3 = arith.constant 0 : index
    %c0_4 = arith.constant 0 : index
    %5 = vector.load %arg2[%c0_2, %c0_3, %c0_4] : memref<1x32x8xf32, #tpu.memory_space<vmem>>, vector<1x32x8xf32>
    %6 = vector.shape_cast %5 : vector<1x32x8xf32> to vector<32x8xf32>
    %c0_5 = arith.constant 0 : index
    %c0_6 = arith.constant 0 : index
    %c0_7 = arith.constant 0 : index
    %7 = vector.load %arg3[%c0_5, %c0_6, %c0_7] : memref<1x1x8xi32, #tpu.memory_space<vmem>>, vector<1x1x8xi32>
    %8 = vector.shape_cast %7 : vector<1x1x8xi32> to vector<1x8xi32>
    %9 = vector.broadcast %8 : vector<1x8xi32> to vector<32x8xi32>
    %10 = arith.cmpi eq, %3, %9 : vector<32x8xi32>
    %cst_8 = arith.constant 0.000000e+00 : f32
    %11 = vector.broadcast %cst_8 : f32 to vector<32x8xf32>
    %12 = arith.subf %11, %6 : vector<32x8xf32>
    %13 = arith.select %10, %12, %6 : vector<32x8xi1>, vector<32x8xf32>
    %14 = arith.minimumf %6, %12 : vector<32x8xf32>
    %15 = math.exp %14 : vector<32x8xf32>
    %cst_9 = arith.constant 0.000000e+00 : f32
    %16 = vector.broadcast %cst_9 : f32 to vector<32x8xf32>
    %17 = arith.maximumf %13, %16 : vector<32x8xf32>
    %18 = math.log1p %15 : vector<32x8xf32>
    %19 = arith.addf %17, %18 : vector<32x8xf32>
    %20 = arith.subf %13, %19 : vector<32x8xf32>
    %cst_10 = arith.constant 2.000000e+00 : f32
    %21 = vector.broadcast %cst_10 : f32 to vector<32x8xf32>
    %22 = arith.mulf %21, %20 : vector<32x8xf32>
    %23 = math.exp %22 : vector<32x8xf32>
    %24 = arith.mulf %19, %23 : vector<32x8xf32>
    %cst_11 = arith.constant 2.500000e-01 : f32
    %cst_12 = arith.constant 7.500000e-01 : f32
    %25 = vector.broadcast %cst_11 : f32 to vector<32x8xf32>
    %26 = vector.broadcast %cst_12 : f32 to vector<32x8xf32>
    %27 = arith.select %10, %25, %26 : vector<32x8xi1>, vector<32x8xf32>
    %28 = arith.mulf %24, %27 : vector<32x8xf32>
    %cst_13 = arith.constant dense<0.000000e+00> : vector<8xf32>
    %29 = vector.multi_reduction <add>, %28, %cst_13 [0] : vector<32x8xf32> to vector<8xf32>
    %30 = vector.shape_cast %29 : vector<8xf32> to vector<1x8xf32>
    %31 = arith.addf %4, %30 : vector<1x8xf32>
    %32 = vector.shape_cast %31 : vector<1x8xf32> to vector<1x1x8xf32>
    %c0_14 = arith.constant 0 : index
    %c0_15 = arith.constant 0 : index
    %c0_16 = arith.constant 0 : index
    %33 = vector.load %arg4[%c0_14, %c0_15, %c0_16] : memref<1x1x8xf32, #tpu.memory_space<vmem>>, vector<1x1x8xf32>
    tpu.vector_store %arg4[%c0_14, %c0_15, %c0_16], %32 {strides = array<i32>} : memref<1x1x8xf32, #tpu.memory_space<vmem>>, vector<1x1x8xf32>,
    return
  }
  func.func @transform_0(%arg0: i32) -> (i32, i32, i32) {
    %c0_i32 = arith.constant 0 : i32
    %c0_i32_0 = arith.constant 0 : i32
    %c0_i32_1 = arith.constant 0 : i32
    %c0_i32_2 = arith.constant 0 : i32
    return %c0_i32, %c0_i32_0, %c0_i32_1 : i32, i32, i32
  }
  func.func @transform_1(%arg0: i32) -> (i32, i32, i32) {
    %c0_i32 = arith.constant 0 : i32
    %c0_i32_0 = arith.constant 0 : i32
    %c0_i32_1 = arith.constant 0 : i32
    return %arg0, %c0_i32, %c0_i32_0 : i32, i32, i32
  }
  func.func @transform_2(%arg0: i32) -> (i32, i32, i32) {
    %c0_i32 = arith.constant 0 : i32
    %c0_i32_0 = arith.constant 0 : i32
    %c0_i32_1 = arith.constant 0 : i32
    return %arg0, %c0_i32, %c0_i32_0 : i32, i32, i32
  }
  func.func @transform_3(%arg0: i32) -> (i32, i32, i32) {
    %c0_i32 = arith.constant 0 : i32
    %c0_i32_0 = arith.constant 0 : i32
    %c0_i32_1 = arith.constant 0 : i32
    return %arg0, %c0_i32, %c0_i32_0 : i32, i32, i32
  }
}

</mosaic_0001>

<llo_original>
// kernel: tpu_custom_call.1
$region0: #{tpu_custom_call.1}
  #allocation0 [shape = 'u32[]', space=smem, size = 0x4, offset = 0x4, fixed_abs, tag = 'smem constant byte address 0x4 - core index']
  #allocation1 [shape = 'u32[144,128]{1,0:T(1,128)}', space=vmem, size = 0x12000, scoped, tag = 'internal scratch']
  %s0 = inlined_call_operand.vmem [shape: s32[1,32,1], index: 0, kind: input, shape index: {}]
  %s1 = inlined_call_operand.vmem [shape: f32[2,32,8], index: 1, kind: input, shape index: {}]
  %s2 = inlined_call_operand.vmem [shape: s32[2,1,8], index: 2, kind: input, shape index: {}]
  %s3 = inlined_call_operand.hbm [shape: f32[2,1,8], index: 3, kind: output, shape index: {}]
  %s4 = sld [smem:[#allocation0]]
  $region45: #{tpu_custom_call.1} parent=0
    _
  %s6 = ssub.s32 1, %s4
  %s7 = scalar_select 0, %s6, %s4
  $region1: #{tpu_custom_call.1} parent=0
    #allocation2 [shape = 'u8[1024]{0}', space=vmem, size = 0x400, scoped, tag = 'output window, operand 0']
    #allocation3 [shape = 's32[2]{0}', space=sflag, size = 0x8, scoped, tag = 'scoped memory for tpu_custom_call.1']
    %8 = vsyncpa [#allocation3], 0
    %s9 = scalar_lea.sflag [#allocation3], 1
    %10 = vsyncpa %s9, 0
    loop: start=0, step=1, limit=4
    $region2: #{tpu_custom_call.1} parent=1 // loop_pre_header
      _
    $region3: #{tpu_custom_call.1} parent=1 // loop_header
      %s12 = sphi 0, %s16
      %p13 = scmp.ge.s32.totalorder %s12, 4
      %s20 = sphi 0, %s20
      %s22 = sphi 0, %s20
      %s23 = sphi 0, %s22
      %s37 = sphi 0, %s23
      %s43 = sphi 0, %s45
      %s46 = sphi 0, %s43
      %s47 = sphi 0, %s46
      %s63 = sphi 0, %s47
      %s69 = sphi 0, %s71
      %s72 = sphi 0, %s69
      %s73 = sphi 0, %s72
      %s89 = sphi 0, %s73
      %s95 = sphi 0, %s97
      %s98 = sphi 0, %s95
      %s99 = sphi 0, %s98
      %s115 = sphi 0, %s99
    $region4: #{tpu_custom_call.1} parent=1 // loop_header_branch
      %15 = sbr.rel (%p13) target = $region8
    $region5: #{tpu_custom_call.1} parent=1 // loop_body
      %s17 = ssub.s32 %s12, 1
      %s18 = ssub.s32 %s12, 2
      %s19 = sadd.s32 %s12, 1
      %s21 = sadd.s32 %s20, 1
      %p24 = scmp.eq.s32.totalorder %s12, 1
      %p25 = scmp.ne.s32.totalorder %s20, %s22
      %p26 = scmp.eq.s32.totalorder %s12, 0
      %p27 = por %p25, %p26
      %p28 = scmp.ne.s32.totalorder %s20, %s22
      %p29 = scmp.eq.s32.totalorder %s17, 1
      %p30 = por %p28, %p29
      %p31 = scmp.ne.s32.totalorder %s22, %s23
      %p32 = scmp.eq.s32.totalorder %s17, 0
      %p33 = por %p31, %p32
      %p34 = scmp.ne.s32.totalorder %s22, %s23
      %p35 = scmp.eq.s32.totalorder %s18, 1
      %p36 = por %p34, %p35
      %p38 = scmp.ne.s32.totalorder %s23, %s37
      %p39 = scmp.eq.s32.totalorder %s18, 0
      %p40 = por %p38, %p39
      %s41 = ssub.s32 %s12, %s19
      %p42 = scmp.eq.s32.totalorder %s41, 0
      %s44 = sadd.s32 %s43, 1
      %s45 = scalar_select %p42, %s43, %s44
      %p48 = pneg %p42
      %p49 = scmp.eq.s32.totalorder %s12, 1
      %p50 = por %p48, %p49
      %p51 = scmp.ne.s32.totalorder %s43, %s46
      %p52 = scmp.eq.s32.totalorder %s12, 0
      %p53 = por %p51, %p52
      %p54 = scmp.ne.s32.totalorder %s43, %s46
      %p55 = scmp.eq.s32.totalorder %s17, 1
      %p56 = por %p54, %p55
      %p57 = scmp.ne.s32.totalorder %s46, %s47
      %p58 = scmp.eq.s32.totalorder %s17, 0
      %p59 = por %p57, %p58
      %p60 = scmp.ne.s32.totalorder %s46, %s47
      %p61 = scmp.eq.s32.totalorder %s18, 1
      %p62 = por %p60, %p61
      %p64 = scmp.ne.s32.totalorder %s47, %s63
      %p65 = scmp.eq.s32.totalorder %s18, 0
      %p66 = por %p64, %p65
      %s67 = ssub.s32 %s12, %s19
      %p68 = scmp.eq.s32.totalorder %s67, 0
      %s70 = sadd.s32 %s69, 1
      %s71 = scalar_select %p68, %s69, %s70
      %p74 = pneg %p68
      %p75 = scmp.eq.s32.totalorder %s12, 1
      %p76 = por %p74, %p75
      %p77 = scmp.ne.s32.totalorder %s69, %s72
      %p78 = scmp.eq.s32.totalorder %s12, 0
      %p79 = por %p77, %p78
      %p80 = scmp.ne.s32.totalorder %s69, %s72
      %p81 = scmp.eq.s32.totalorder %s17, 1
      %p82 = por %p80, %p81
      %p83 = scmp.ne.s32.totalorder %s72, %s73
      %p84 = scmp.eq.s32.totalorder %s17, 0
      %p85 = por %p83, %p84
      %p86 = scmp.ne.s32.totalorder %s72, %s73
      %p87 = scmp.eq.s32.totalorder %s18, 1
      %p88 = por %p86, %p87
      %p90 = scmp.ne.s32.totalorder %s73, %s89
      %p91 = scmp.eq.s32.totalorder %s18, 0
      %p92 = por %p90, %p91
      %s93 = ssub.s32 %s12, %s19
      %p94 = scmp.eq.s32.totalorder %s93, 0
      %s96 = sadd.s32 %s95, 1
      %s97 = scalar_select %p94, %s95, %s96
      %p100 = pneg %p94
      %p101 = scmp.eq.s32.totalorder %s12, 1
      %p102 = por %p100, %p101
      %p103 = scmp.ne.s32.totalorder %s95, %s98
      %p104 = scmp.eq.s32.totalorder %s12, 0
      %p105 = por %p103, %p104
      %p106 = scmp.ne.s32.totalorder %s95, %s98
      %p107 = scmp.eq.s32.totalorder %s17, 1
      %p108 = por %p106, %p107
      %p109 = scmp.ne.s32.totalorder %s98, %s99
      %p110 = scmp.eq.s32.totalorder %s17, 0
      %p111 = por %p109, %p110
      %p112 = scmp.ne.s32.totalorder %s98, %s99
      %p113 = scmp.eq.s32.totalorder %s18, 1
      %p114 = por %p112, %p113
      %p116 = scmp.ne.s32.totalorder %s99, %s115
      %p117 = scmp.eq.s32.totalorder %s18, 0
      %p118 = por %p116, %p117
      %p119 = scmp.le.s32.totalorder 1, %s12
      %p120 = scmp.lt.s32.totalorder %s12, 3
      %p121 = pnand %p119, %p120
      %p122 = pneg %p121
      // Predicated region
      $region9: #{tpu_custom_call.1} parent=5 // pred_check
        _
      $region10: #{tpu_custom_call.1} parent=5 // pred_check_branch
        %124 = sbr.rel (%p121) target = $region12
      $region11: #{tpu_custom_call.1} parent=5 // pred_region
        %s125 = ssub.s32 %s12, 1
        // Predicated region
        $region13: #{tpu_custom_call.1} parent=11 // pred_check
          %p126 = pneg %p33
        $region14: #{tpu_custom_call.1} parent=11 // pred_check_branch
          %128 = sbr.rel (%p126) target = $region16
        $region15: #{tpu_custom_call.1} parent=11 // pred_region
          _
        $region16: #{tpu_custom_call.1} parent=11 // pred_fallthru
          _
      $region12: #{tpu_custom_call.1} parent=5 // pred_fallthru
        _
      %p129 = scmp.lt.s32.totalorder %s12, 2
      // Predicated region
      $region17: #{tpu_custom_call.1} parent=5 // pred_check
        %p130 = pneg %p129
      $region18: #{tpu_custom_call.1} parent=5 // pred_check_branch
        %132 = sbr.rel (%p130) target = $region20
      $region19: #{tpu_custom_call.1} parent=5 // pred_region
        // Predicated region
        $region21: #{tpu_custom_call.1} parent=19 // pred_check
          %p133 = pneg %p53
        $region22: #{tpu_custom_call.1} parent=19 // pred_check_branch
          %135 = sbr.rel (%p133) target = $region24
        $region23: #{tpu_custom_call.1} parent=19 // pred_region
          %p136 = scmp.lt.s32.totalorder %s12, 1
          %s137 = scalar_select %p136, %s12, 1
          %s138 = smul.addr %s137, 4
          %s139 = smul.addr %s138, 8
          %s140 = scalar_lea.vmem %s1, %s139
        $region24: #{tpu_custom_call.1} parent=19 // pred_fallthru
          _
        // Predicated region
        $region25: #{tpu_custom_call.1} parent=19 // pred_check
          %p141 = pneg %p79
        $region26: #{tpu_custom_call.1} parent=19 // pred_check_branch
          %143 = sbr.rel (%p141) target = $region28
        $region27: #{tpu_custom_call.1} parent=19 // pred_region
          %p144 = scmp.lt.s32.totalorder %s12, 1
          %s145 = scalar_select %p144, %s12, 1
          %s146 = scalar_lea.vmem %s2, %s145
        $region28: #{tpu_custom_call.1} parent=19 // pred_fallthru
          _
      $region20: #{tpu_custom_call.1} parent=5 // pred_fallthru
        _
      %p147 = scmp.le.s32.totalorder 1, %s12
      %p148 = scmp.lt.s32.totalorder %s12, 3
      %p149 = pnand %p147, %p148
      %p150 = pneg %p149
      // Predicated region
      $region29: #{tpu_custom_call.1} parent=5 // pred_check
        _
      $region30: #{tpu_custom_call.1} parent=5 // pred_check_branch
        %152 = sbr.rel (%p149) target = $region32
      $region31: #{tpu_custom_call.1} parent=5 // pred_region
        %s153 = ssub.s32 %s12, 1
        %p154 = pneg %p33
        %p155 = pneg %p30
        %p156 = scmp.lt.s32.totalorder %s17, 1
        %s157 = scalar_select %p156, %s17, 1
        %s158 = smul.addr %s157, 4
        %s159 = smul.addr %s158, 8
        %s160 = scalar_lea.vmem %s1, %s159
        %p161 = pneg %p59
        %p162 = pneg %p56
        %p163 = scmp.lt.s32.totalorder %s17, 1
        %s164 = scalar_select %p163, %s17, 1
        %s165 = scalar_lea.vmem %s2, %s164
        %p166 = pneg %p85
        %p167 = pneg %p82
        %p168 = pneg %p111
        %p169 = pneg %p108
        %s170 = sand.u32 %s98, 1
        %s171 = scalar_lea.sflag [#allocation3], %s170
        %s172 = sand.u32 %s98, 1
        %s173 = scalar_lea.vmem [#allocation2], %s172
        %p174 = scmp.lt.s32.totalorder %s17, 1
        %s175 = scalar_select %p174, %s17, 1
        %s176 = smul.addr %s175, 4
        %s177 = smul.addr %s176, 8
        %s178 = scalar_lea.vmem %s1, %s177
        %p179 = scmp.lt.s32.totalorder %s17, 1
        %s180 = scalar_select %p179, %s17, 1
        %s181 = scalar_lea.vmem %s2, %s180
        %v182 = vld [vmem:[%s0] sm:$0xff]
        %v183 = vld [vmem:[%s0 + $0x8] sm:$0xff]
        %v184 = vld [vmem:[%s0 + $0x10] sm:$0xff]
        %v185 = vld [vmem:[%s0 + $0x18] sm:$0xff]
        %186 = vset.pattern.permute.xlu0 0
        %187 = vperm.xlu0 %186, %v182
        %v188 = vpop.permute.xlu0 %187
        %189 = vset.pattern.permute.xlu0 0
        %190 = vperm.xlu0 %189, %v183
        %v191 = vpop.permute.xlu0 %190
        %192 = vset.pattern.permute.xlu0 0
        %193 = vperm.xlu0 %192, %v184
        %v194 = vpop.permute.xlu0 %193
        %195 = vset.pattern.permute.xlu0 0
        %196 = vperm.xlu0 %195, %v185
        %v197 = vpop.permute.xlu0 %196
        %v198 = vld [vmem:[%s178] sm:$0xff]
        %v199 = vld [vmem:[%s178 + $0x8] sm:$0xff]
        %v200 = vld [vmem:[%s178 + $0x10] sm:$0xff]
        %v201 = vld [vmem:[%s178 + $0x18] sm:$0xff]
        %v202 = vld [vmem:[%s181] sm:$0x1]
        %v203 = vlaneseq
        %v204 = vshrl.u32 %v203, 7
        %v205 = vsub.s32 0, %v204
        %v206 = vrot.slane %v202, %v205
        %vm207 = vcmp.eq.s32.totalorder %v188, %v206
        %vm208 = vcmp.eq.s32.totalorder %v191, %v206
        %vm209 = vcmp.eq.s32.totalorder %v194, %v206
        %vm210 = vcmp.eq.s32.totalorder %v197, %v206
        %v211 = vsub.f32 0.0, %v198
        %v212 = vsub.f32 0.0, %v199
        %v213 = vsub.f32 0.0, %v200
        %v214 = vsub.f32 0.0, %v201
        %v215 = vsel %vm207, %v211, %v198
        %v216 = vsel %vm208, %v212, %v199
        %v217 = vsel %vm209, %v213, %v200
        %v218 = vsel %vm210, %v214, %v201
        %v219 = vmin.f32 %v198, %v211
        %v220 = vmin.f32 %v199, %v212
        %v221 = vmin.f32 %v200, %v213
        %v222 = vmin.f32 %v201, %v214
        %v223 = vmul.f32 %v219, 1.442695
        %v224 = vpow.pop %v223
        %v225 = vmul.f32 %v220, 1.442695
        %v226 = vpow.pop %v225
        %v227 = vmul.f32 %v221, 1.442695
        %v228 = vpow.pop %v227
        %v229 = vmul.f32 %v222, 1.442695
        %v230 = vpow.pop %v229
        %v231 = vmax.f32 %v215, 0.0
        %v232 = vmax.f32 %v216, 0.0
        %v233 = vmax.f32 %v217, 0.0
        %v234 = vmax.f32 %v218, 0.0
        %v235 = vadd.f32 %v224, 1.0
        %v236 = vlog2.pop %v235
        %v237 = vmul.f32 %v236, 0.6931472
        %v238 = vmul.f32 -0.5, %v224
        %v239 = vadd.f32 %v238, 1.0
        %v240 = vmul.f32 %v239, %v224
        %v241 = vand.u32 2147483647, %v224
        %vm242 = vcmp.lt.f32.partialorder %v241, 0.0004427343
        %v243 = vsel %vm242, %v240, %v237
        %v244 = vadd.f32 %v226, 1.0
        %v245 = vlog2.pop %v244
        %v246 = vmul.f32 %v245, 0.6931472
        %v247 = vmul.f32 -0.5, %v226
        %v248 = vadd.f32 %v247, 1.0
        %v249 = vmul.f32 %v248, %v226
        %v250 = vand.u32 2147483647, %v226
        %vm251 = vcmp.lt.f32.partialorder %v250, 0.0004427343
        %v252 = vsel %vm251, %v249, %v246
        %v253 = vadd.f32 %v228, 1.0
        %v254 = vlog2.pop %v253
        %v255 = vmul.f32 %v254, 0.6931472
        %v256 = vmul.f32 -0.5, %v228
        %v257 = vadd.f32 %v256, 1.0
        %v258 = vmul.f32 %v257, %v228
        %v259 = vand.u32 2147483647, %v228
        %vm260 = vcmp.lt.f32.partialorder %v259, 0.0004427343
        %v261 = vsel %vm260, %v258, %v255
        %v262 = vadd.f32 %v230, 1.0
        %v263 = vlog2.pop %v262
        %v264 = vmul.f32 %v263, 0.6931472
        %v265 = vmul.f32 -0.5, %v230
        %v266 = vadd.f32 %v265, 1.0
        %v267 = vmul.f32 %v266, %v230
        %v268 = vand.u32 2147483647, %v230
        %vm269 = vcmp.lt.f32.partialorder %v268, 0.0004427343
        %v270 = vsel %vm269, %v267, %v264
        %v271 = vadd.f32 %v231, %v243
        %v272 = vadd.f32 %v232, %v252
        %v273 = vadd.f32 %v233, %v261
        %v274 = vadd.f32 %v234, %v270
        %v275 = vsub.f32 %v215, %v271
        %v276 = vsub.f32 %v216, %v272
        %v277 = vsub.f32 %v217, %v273
        %v278 = vsub.f32 %v218, %v274
        %v279 = vmul.f32 %v275, 2.0
        %v280 = vmul.f32 %v276, 2.0
        %v281 = vmul.f32 %v277, 2.0
        %v282 = vmul.f32 %v278, 2.0
        %v283 = vmul.f32 %v279, 1.442695
        %v284 = vpow.pop %v283
        %v285 = vmul.f32 %v280, 1.442695
        %v286 = vpow.pop %v285
        %v287 = vmul.f32 %v281, 1.442695
        %v288 = vpow.pop %v287
        %v289 = vmul.f32 %v282, 1.442695
        %v290 = vpow.pop %v289
        %v291 = vmul.f32 %v271, %v284
        %v292 = vmul.f32 %v272, %v286
        %v293 = vmul.f32 %v273, %v288
        %v294 = vmul.f32 %v274, %v290
        %v295 = vsel %vm207, 0.25, 0.75
        %v296 = vsel %vm208, 0.25, 0.75
        %v297 = vsel %vm209, 0.25, 0.75
        %v298 = vsel %vm210, 0.25, 0.75
        %v299 = vmul.f32 %v291, %v295
        %v300 = vmul.f32 %v292, %v296
        %v301 = vmul.f32 %v293, %v297
        %v302 = vmul.f32 %v294, %v298
        %vm303 = vcmask 64512
        %v304 = vsel %vm303, %v299, 0.0
        %v305 = vsel %vm303, %v300, 0.0
        %v306 = vadd.f32 %v304, %v305
        %v307 = vsel %vm303, %v301, 0.0
        %v308 = vadd.f32 %v306, %v307
        %v309 = vsel %vm303, %v302, 0.0
        %v310 = vadd.f32 %v308, %v309
        %v311 = vrot.slane %v310, 4
        %v312 = vadd.f32 %v310, %v311
        %v313 = vrot.slane %v312, 2
        %v314 = vadd.f32 %v312, %v313
        %v315 = vrot.slane %v314, 1
        %v316 = vadd.f32 %v314, %v315
        %v317 = vadd.f32 %v316, 0.0
        %vm318 = vcmask 57344
        %319 = vst.msk [vmem:[%s173] sm:$0x1] %vm318, %v317
        %s320 = sand.u32 %s98, 1
        %s321 = scalar_lea.sflag [#allocation3], %s320
        %s322 = sand.u32 %s98, 1
        %s323 = scalar_lea.vmem [#allocation2], %s322
        // Predicated region
        $region33: #{tpu_custom_call.1} parent=31 // pred_check
          %p324 = pneg %p108
        $region34: #{tpu_custom_call.1} parent=31 // pred_check_branch
          %326 = sbr.rel (%p324) target = $region36
        $region35: #{tpu_custom_call.1} parent=31 // pred_region
          %s328 = ssub.s32 16, 16
          %329 = vsyncadd %s321, %s328
          %s330 = smul.addr %s17, 16
          %s331 = scalar_lea.hbm %s3, %s330
          %s333 = sshll.u32 %s323, 4
          %s334 = int_to_ptr.vmem [resolvable:$true] %s333
          %336 = dma.vmem_to_hbm [thread:$0]  %s334, 16, %s331, %s321
        $region36: #{tpu_custom_call.1} parent=31 // pred_fallthru
          _
      $region32: #{tpu_custom_call.1} parent=5 // pred_fallthru
        _
      %p337 = scmp.le.s32.totalorder 2, %s12
      // Predicated region
      $region37: #{tpu_custom_call.1} parent=5 // pred_check
        %p338 = pneg %p337
      $region38: #{tpu_custom_call.1} parent=5 // pred_check_branch
        %340 = sbr.rel (%p338) target = $region40
      $region39: #{tpu_custom_call.1} parent=5 // pred_region
        %s341 = ssub.s32 %s12, 2
        // Predicated region
        $region41: #{tpu_custom_call.1} parent=39 // pred_check
          %p342 = pneg %p114
        $region42: #{tpu_custom_call.1} parent=39 // pred_check_branch
          %344 = sbr.rel (%p342) target = $region44
        $region43: #{tpu_custom_call.1} parent=39 // pred_region
          %s345 = sand.u32 %s99, 1
          %s346 = scalar_lea.sflag [#allocation3], %s345
          %s347 = sand.u32 %s99, 1
          %s348 = scalar_lea.vmem [#allocation2], %s347
          %349 = dma.done %s346, 16
        $region44: #{tpu_custom_call.1} parent=39 // pred_fallthru
          _
      $region40: #{tpu_custom_call.1} parent=5 // pred_fallthru
        _
    $region6: #{tpu_custom_call.1} parent=1 // loop_footer
      %s16 = sadd.s32 1, %s12
    $region7: #{tpu_custom_call.1} parent=1 // loop_footer_branch
      %11 = sbr.rel target = $region3
    $region8: #{tpu_custom_call.1} parent=1 // loop_exit
      _
    %350 = vsyncpa [#allocation3], 1
    %s351 = scalar_lea.sflag [#allocation3], 1
    %352 = vsyncpa %s351, 1

</llo_original>
